<compile_context>
chip_gen: v5e
topology: v5e:2x2
jax: 0.10.0
libtpu: 0.0.40
codegen_flags: <defaults>
</compile_context>

<pallas_src>
import numpy as np
import jax
import jax.numpy as jnp
from jax import lax
from jax.experimental import pallas as pl
from jax.experimental.pallas import tpu as pltpu


def _nhc_kernel(q_ref, rows_ref, scal_ref, dvdt_ref, baths_ref):
    """Fused LJ force + kinetic energy + NHC thermostat derivative.

    q_ref    : (N, 3)  positions, particle index on sublanes (column orientation)
    rows_ref : (8, N)  [qx, qy, qz, vx, vy, vz, m, 1/m], particle index on lanes
    scal_ref : (4+2nc,) SMEM [24*eps, sigma^2, T, target_ke, p_v(nc), 1/Q(nc)]
    dvdt_ref : (3, N)  lane-dense dv/dt output
    baths_ref: (nc,)   SMEM dp_v/dt output
    """
    q_cols = q_ref[...]                         # (N, 3)
    rows = rows_ref[...]                        # (8, N)

    nc = baths_ref.shape[0]
    eps24 = scal_ref[0]                         # 24 * eps
    sigma2 = scal_ref[1]                        # sigma ** 2
    T = scal_ref[2]                             # temperature
    target_ke = scal_ref[3]                     # 0.5 * N_dof * T
    pv = [scal_ref[4 + i] for i in range(nc)]
    invq = [scal_ref[4 + nc + i] for i in range(nc)]
    pv0_over_Q0 = pv[0] * invq[0]               # scalar-unit multiply (divide-free)

    q_rows = rows[0:3, :]                       # (3, N)
    v_rows = rows[3:6, :]                       # (3, N)
    m_row = rows[6:7, :]                        # (1, N)
    inv_m_row = rows[7:8, :]                    # (1, N)

    # Kinetic energy: 0.5 * sum(p^2 / m) == 0.5 * sum(v^2 * m)   (divide-free).
    sys_ke = 0.5 * jnp.sum(v_rows * v_rows * m_row)

    # ---- Lennard-Jones pair interaction (dense all-pairs), f32 throughout ----------
    N = q_cols.shape[0]
    ri = lax.broadcasted_iota(jnp.int32, (N, N), 0)
    cj = lax.broadcasted_iota(jnp.int32, (N, N), 1)
    diag = ri == cj

    # Explicit pairwise displacements: d[i, j] = q[i] - q[j]  (i on sublanes, j lanes).
    dx = q_cols[:, 0:1] - q_rows[0:1, :]
    dy = q_cols[:, 1:2] - q_rows[1:2, :]
    dz = q_cols[:, 2:3] - q_rows[2:3, :]
    r2 = dx * dx + dy * dy + dz * dz
    r2 = jnp.where(diag, 1.0, r2)               # keep the diagonal finite

    # EUP approximate reciprocal + one Newton refinement step (~f32 accuracy).
    inv_r2 = pl.reciprocal(r2, approx=True)
    inv_r2 = inv_r2 * (2.0 - r2 * inv_r2)

    s2 = sigma2 * inv_r2
    s6 = s2 * s2 * s2
    w = eps24 * (2.0 * (s6 * s6) - s6) * inv_r2  # symmetric pair-force scale
    w = jnp.where(diag, 0.0, w)

    # ---- Direct force accumulation, lane-dense (3, N) -------------------------------
    # f[d, j] = sum_i w[j, i] * (q_d[j] - q_d[i]) = -colsum(w * d_d)[j]   (w symmetric)
    # Three sublane (axis=0) reductions; no cancellation between large terms.
    fx = -jnp.sum(w * dx, axis=0, keepdims=True)    # (1, N)
    fy = -jnp.sum(w * dy, axis=0, keepdims=True)
    fz = -jnp.sum(w * dz, axis=0, keepdims=True)
    f_rows = jnp.concatenate([fx, fy, fz], axis=0)  # (3, N)

    # dvdt = (f - p_v[0] * p / Q[0]) / m = f * (1/m) - (p_v[0]/Q[0]) * v  (divide-free)
    dvdt_ref[...] = f_rows * inv_m_row - pv0_over_Q0 * v_rows

    # ---- Nose-Hoover bath chain (scalar unit, SMEM in / SMEM out) -------------------
    baths_ref[0] = (2.0 * (sys_ke - target_ke) - pv[0] * pv[1] * invq[1])
    for i in range(1, nc - 1):                  # unrolled at trace time (nc is static)
        baths_ref[i] = (pv[i - 1] * pv[i - 1] * invq[i - 1] - T
                        - pv[i + 1] * pv[i] * invq[i + 1])
    baths_ref[nc - 1] = pv[nc - 2] * pv[nc - 2] * invq[nc - 2] - T


class NoseHooverChainPallas:
    """JAX/Pallas port of srcLJ/md/nhchain.py::NoseHooverChain (forward only)."""

    def __init__(self, masses, T, num_chains=3, Q=1.0, eps=1.0, sigma=1.0, dim=3):
        self.mass = jnp.asarray(masses, jnp.float32)
        self.T = float(T)
        self.dim = int(dim)
        n_atoms = int(self.mass.shape[0])
        self.n_atoms = n_atoms
        self.N_dof = n_atoms * self.dim
        self.num_chains = int(num_chains)
        self.Q = jnp.asarray([Q] + [Q / n_atoms] * (num_chains - 1), jnp.float32)
        self.eps = float(eps)
        self.sigma = float(sigma)

        # Constants precomputed once (never per step): mass / 1/mass as lane-dense
        # (1, N) rows (appended into the per-step state slab), 1/Q, parameter block.
        self._m_row = self.mass.reshape(1, n_atoms)
        self._invm_row = 1.0 / self._m_row
        self._invQ = (1.0 / self.Q).astype(jnp.float32)
        self._refresh_params()

    def _refresh_params(self):
        self.target_ke = 0.5 * self.N_dof * self.T
        self._params = jnp.array(
            [24.0 * self.eps, self.sigma * self.sigma, self.T, self.target_ke],
            dtype=jnp.float32)

    def update_T(self, T):
        self.T = float(T)
        self._refresh_params()

    def forward(self, t, state):
        v, q, p_v = state
        v = jnp.asarray(v, jnp.float32)
        q = jnp.asarray(q, jnp.float32)
        p_v = jnp.asarray(p_v, jnp.float32)
        N, dim, nc = self.n_atoms, self.dim, self.num_chains

        # One lane-dense (2*dim+2, N) VMEM slab carries q^T, v^T, m, 1/m (tiny concat,
        # fuses into the jitted step) and one SMEM vector carries every scalar.
        rows = jnp.concatenate([q.T, v.T, self._m_row, self._invm_row], axis=0)
        scal = jnp.concatenate([self._params, p_v, self._invQ])

        dvdt_rows, baths = pl.pallas_call(
            _nhc_kernel,
            out_shape=(
                jax.ShapeDtypeStruct((dim, N), jnp.float32),     # lane-dense dvdt
                jax.ShapeDtypeStruct((nc,), jnp.float32),        # bath chain
            ),
            in_specs=[
                pl.BlockSpec(memory_space=pltpu.MemorySpace.VMEM),   # q       (N, 3)
                pl.BlockSpec(memory_space=pltpu.MemorySpace.VMEM),   # slab    (8, N)
                pl.BlockSpec(memory_space=pltpu.MemorySpace.SMEM),   # scalars (4+2nc,)
            ],
            out_specs=(
                pl.BlockSpec(memory_space=pltpu.MemorySpace.VMEM),   # dvdt    (3, N)
                pl.BlockSpec(memory_space=pltpu.MemorySpace.SMEM),   # baths   (nc,)
            ),
        )(q, rows, scal)

        # Transpose back to the module's (N, dim) return convention (tiny, fuses).
        return dvdt_rows.T, v, baths


if __name__ == "__main__":
    N, dim, num_chains = 32, 3, 3
    T = 0.7
    eps, sigma = 1.0, 1.0

    # Particles on a 4x4x2 lattice (spacing 1.5*sigma) plus a small jitter so the
    # Lennard-Jones forces stay well-conditioned.
    ii, jj, kk = np.meshgrid(np.arange(4), np.arange(4), np.arange(2), indexing="ij")
    lattice = np.stack([ii, jj, kk], axis=-1).reshape(-1, 3).astype(np.float32) * 1.5

    key = jax.random.PRNGKey(0)
    k1, k2, k3, k4 = jax.random.split(key, 4)
    q = jnp.asarray(lattice) + 0.05 * jax.random.normal(k1, (N, dim), jnp.float32)
    v = 0.1 * jax.random.normal(k2, (N, dim), jnp.float32)
    mass = 1.0 + jax.random.uniform(k3, (N,), dtype=jnp.float32)
    p_v = 0.1 * jax.random.normal(k4, (num_chains,), jnp.float32)

    nhc = NoseHooverChainPallas(mass, T, num_chains=num_chains, Q=1.0,
                                eps=eps, sigma=sigma, dim=dim)

    step = jax.jit(lambda v_, q_, pv_: nhc.forward(0.0, (v_, q_, pv_)))
    dvdt, v_out, baths = jax.block_until_ready(step(v, q, p_v))

    # Pure-JAX reference: autodiff through the LJ potential, mirroring compute_grad.
    def lj_energy(qq):
        diff = qq[:, None, :] - qq[None, :, :]
        r2 = (diff ** 2).sum(-1) + jnp.eye(N, dtype=jnp.float32)
        s6 = (sigma ** 2 / r2) ** 3
        e = 4.0 * eps * (s6 ** 2 - s6) * (1.0 - jnp.eye(N, dtype=jnp.float32))
        return 0.5 * e.sum()

    f_ref = -jax.grad(lj_energy)(q)
    p_ref = v * mass[:, None]
    ke_ref = 0.5 * (p_ref ** 2 / mass[:, None]).sum()
    coupled_ref = p_v[0] * p_ref / nhc.Q[0]
    dvdt_ref = (f_ref - coupled_ref) / mass[:, None]
    dpvdt_0_ref = 2.0 * (ke_ref - T * N * dim * 0.5) - p_v[0] * p_v[1] / nhc.Q[1]
    dpvdt_mid_ref = p_v[:-2] ** 2 / nhc.Q[:-2] - T - p_v[2:] * p_v[1:-1] / nhc.Q[2:]
    dpvdt_last_ref = p_v[-2] ** 2 / nhc.Q[-2] - T
    baths_ref = jnp.concatenate(
        [dpvdt_0_ref[None], dpvdt_mid_ref, dpvdt_last_ref[None]]
    )

    assert dvdt.shape == (N, dim) and v_out.shape == (N, dim)
    assert baths.shape == (num_chains,)
    np.testing.assert_allclose(np.asarray(dvdt), np.asarray(dvdt_ref),
                               rtol=1e-3, atol=1e-3)
    np.testing.assert_allclose(np.asarray(v_out), np.asarray(v),
                               rtol=1e-6, atol=1e-6)
    np.testing.assert_allclose(np.asarray(baths), np.asarray(baths_ref),
                               rtol=1e-3, atol=1e-3)
    print("KERNEL_OK")
</pallas_src>

<mosaic_0001>
module attributes {stable_mosaic.version = 11 : i64} {
  func.func @_nhc_kernel(%arg0: memref<32x3xf32, #tpu.memory_space<vmem>>, %arg1: memref<8x32xf32, #tpu.memory_space<vmem>>, %arg2: memref<10xf32, #tpu.memory_space<smem>>, %arg3: memref<3x32xf32, #tpu.memory_space<vmem>>, %arg4: memref<3xf32, #tpu.memory_space<smem>>) attributes {dimension_semantics = [], scalar_prefetch = 0 : i64, scratch_operands = 0 : i64, tpu.core_type = #tpu.core_type<tc>} {
    %c0 = arith.constant 0 : index
    %c0_0 = arith.constant 0 : index
    %0 = vector.load %arg0[%c0, %c0_0] : memref<32x3xf32, #tpu.memory_space<vmem>>, vector<32x3xf32>
    %c0_1 = arith.constant 0 : index
    %c0_2 = arith.constant 0 : index
    %1 = vector.load %arg1[%c0_1, %c0_2] : memref<8x32xf32, #tpu.memory_space<vmem>>, vector<8x32xf32>
    %c0_3 = arith.constant 0 : index
    %2 = memref.load %arg2[%c0_3] : memref<10xf32, #tpu.memory_space<smem>>
    %c1 = arith.constant 1 : index
    %3 = memref.load %arg2[%c1] : memref<10xf32, #tpu.memory_space<smem>>
    %c2 = arith.constant 2 : index
    %4 = memref.load %arg2[%c2] : memref<10xf32, #tpu.memory_space<smem>>
    %c3 = arith.constant 3 : index
    %5 = memref.load %arg2[%c3] : memref<10xf32, #tpu.memory_space<smem>>
    %c4 = arith.constant 4 : index
    %6 = memref.load %arg2[%c4] : memref<10xf32, #tpu.memory_space<smem>>
    %c5 = arith.constant 5 : index
    %7 = memref.load %arg2[%c5] : memref<10xf32, #tpu.memory_space<smem>>
    %c6 = arith.constant 6 : index
    %8 = memref.load %arg2[%c6] : memref<10xf32, #tpu.memory_space<smem>>
    %c7 = arith.constant 7 : index
    %9 = memref.load %arg2[%c7] : memref<10xf32, #tpu.memory_space<smem>>
    %c8 = arith.constant 8 : index
    %10 = memref.load %arg2[%c8] : memref<10xf32, #tpu.memory_space<smem>>
    %c9 = arith.constant 9 : index
    %11 = memref.load %arg2[%c9] : memref<10xf32, #tpu.memory_space<smem>>
    %12 = arith.mulf %6, %9 : f32
    %13 = vector.extract_strided_slice %1 {offsets = [0, 0], sizes = [3, 32], strides = [1, 1]} : vector<8x32xf32> to vector<3x32xf32>
    %14 = vector.extract_strided_slice %1 {offsets = [3, 0], sizes = [3, 32], strides = [1, 1]} : vector<8x32xf32> to vector<3x32xf32>
    %15 = vector.extract_strided_slice %1 {offsets = [6, 0], sizes = [1, 32], strides = [1, 1]} : vector<8x32xf32> to vector<1x32xf32>
    %16 = vector.extract_strided_slice %1 {offsets = [7, 0], sizes = [1, 32], strides = [1, 1]} : vector<8x32xf32> to vector<1x32xf32>
    %17 = arith.mulf %14, %14 : vector<3x32xf32>
    %18 = vector.broadcast %15 : vector<1x32xf32> to vector<3x32xf32>
    %19 = arith.mulf %17, %18 : vector<3x32xf32>
    %20 = vector.shape_cast %19 : vector<3x32xf32> to vector<1x3x32xf32>
    %cst = arith.constant dense<0.000000e+00> : vector<1xf32>
    %21 = vector.multi_reduction <add>, %20, %cst [1, 2] : vector<1x3x32xf32> to vector<1xf32>
    %22 = vector.shape_cast %21 : vector<1xf32> to vector<1x1x1xf32>
    %23 = vector.extract %22[0, 0, 0] : f32 from vector<1x1x1xf32>
    %cst_4 = arith.constant 5.000000e-01 : f32
    %24 = arith.mulf %cst_4, %23 : f32
    %25 = tpu.iota {dimensions = array<i32: 0>} : vector<32x32xi32>
    %26 = tpu.iota {dimensions = array<i32: 1>} : vector<32x32xi32>
    %27 = arith.cmpi eq, %25, %26 : vector<32x32xi32>
    %28 = vector.extract_strided_slice %0 {offsets = [0, 0], sizes = [32, 1], strides = [1, 1]} : vector<32x3xf32> to vector<32x1xf32>
    %29 = vector.extract_strided_slice %13 {offsets = [0, 0], sizes = [1, 32], strides = [1, 1]} : vector<3x32xf32> to vector<1x32xf32>
    %30 = vector.broadcast %28 : vector<32x1xf32> to vector<32x32xf32>
    %31 = vector.broadcast %29 : vector<1x32xf32> to vector<32x32xf32>
    %32 = arith.subf %30, %31 : vector<32x32xf32>
    %33 = vector.extract_strided_slice %0 {offsets = [0, 1], sizes = [32, 1], strides = [1, 1]} : vector<32x3xf32> to vector<32x1xf32>
    %34 = vector.extract_strided_slice %13 {offsets = [1, 0], sizes = [1, 32], strides = [1, 1]} : vector<3x32xf32> to vector<1x32xf32>
    %35 = vector.broadcast %33 : vector<32x1xf32> to vector<32x32xf32>
    %36 = vector.broadcast %34 : vector<1x32xf32> to vector<32x32xf32>
    %37 = arith.subf %35, %36 : vector<32x32xf32>
    %38 = vector.extract_strided_slice %0 {offsets = [0, 2], sizes = [32, 1], strides = [1, 1]} : vector<32x3xf32> to vector<32x1xf32>
    %39 = vector.extract_strided_slice %13 {offsets = [2, 0], sizes = [1, 32], strides = [1, 1]} : vector<3x32xf32> to vector<1x32xf32>
    %40 = vector.broadcast %38 : vector<32x1xf32> to vector<32x32xf32>
    %41 = vector.broadcast %39 : vector<1x32xf32> to vector<32x32xf32>
    %42 = arith.subf %40, %41 : vector<32x32xf32>
    %43 = arith.mulf %32, %32 : vector<32x32xf32>
    %44 = arith.mulf %37, %37 : vector<32x32xf32>
    %45 = arith.addf %43, %44 : vector<32x32xf32>
    %46 = arith.mulf %42, %42 : vector<32x32xf32>
    %47 = arith.addf %45, %46 : vector<32x32xf32>
    %cst_5 = arith.constant 1.000000e+00 : f32
    %48 = vector.broadcast %cst_5 : f32 to vector<32x32xf32>
    %49 = arith.select %27, %48, %47 : vector<32x32xi1>, vector<32x32xf32>
    %50 = tpu.reciprocal %49 {approx = true} : vector<32x32xf32> -> vector<32x32xf32>
    %51 = arith.mulf %49, %50 : vector<32x32xf32>
    %cst_6 = arith.constant 2.000000e+00 : f32
    %52 = vector.broadcast %cst_6 : f32 to vector<32x32xf32>
    %53 = arith.subf %52, %51 : vector<32x32xf32>
    %54 = arith.mulf %50, %53 : vector<32x32xf32>
    %55 = vector.broadcast %3 : f32 to vector<32x32xf32>
    %56 = arith.mulf %55, %54 : vector<32x32xf32>
    %57 = arith.mulf %56, %56 : vector<32x32xf32>
    %58 = arith.mulf %57, %56 : vector<32x32xf32>
    %59 = arith.mulf %58, %58 : vector<32x32xf32>
    %cst_7 = arith.constant 2.000000e+00 : f32
    %60 = vector.broadcast %cst_7 : f32 to vector<32x32xf32>
    %61 = arith.mulf %60, %59 : vector<32x32xf32>
    %62 = arith.subf %61, %58 : vector<32x32xf32>
    %63 = vector.broadcast %2 : f32 to vector<32x32xf32>
    %64 = arith.mulf %63, %62 : vector<32x32xf32>
    %65 = arith.mulf %64, %54 : vector<32x32xf32>
    %cst_8 = arith.constant 0.000000e+00 : f32
    %66 = vector.broadcast %cst_8 : f32 to vector<32x32xf32>
    %67 = arith.select %27, %66, %65 : vector<32x32xi1>, vector<32x32xf32>
    %68 = arith.mulf %67, %32 : vector<32x32xf32>
    %cst_9 = arith.constant dense<0.000000e+00> : vector<32xf32>
    %69 = vector.multi_reduction <add>, %68, %cst_9 [0] : vector<32x32xf32> to vector<32xf32>
    %70 = vector.shape_cast %69 : vector<32xf32> to vector<1x32xf32>
    %cst_10 = arith.constant 0.000000e+00 : f32
    %71 = vector.broadcast %cst_10 : f32 to vector<1x32xf32>
    %72 = arith.subf %71, %70 : vector<1x32xf32>
    %73 = arith.mulf %67, %37 : vector<32x32xf32>
    %cst_11 = arith.constant dense<0.000000e+00> : vector<32xf32>
    %74 = vector.multi_reduction <add>, %73, %cst_11 [0] : vector<32x32xf32> to vector<32xf32>
    %75 = vector.shape_cast %74 : vector<32xf32> to vector<1x32xf32>
    %cst_12 = arith.constant 0.000000e+00 : f32
    %76 = vector.broadcast %cst_12 : f32 to vector<1x32xf32>
    %77 = arith.subf %76, %75 : vector<1x32xf32>
    %78 = arith.mulf %67, %42 : vector<32x32xf32>
    %cst_13 = arith.constant dense<0.000000e+00> : vector<32xf32>
    %79 = vector.multi_reduction <add>, %78, %cst_13 [0] : vector<32x32xf32> to vector<32xf32>
    %80 = vector.shape_cast %79 : vector<32xf32> to vector<1x32xf32>
    %cst_14 = arith.constant 0.000000e+00 : f32
    %81 = vector.broadcast %cst_14 : f32 to vector<1x32xf32>
    %82 = arith.subf %81, %80 : vector<1x32xf32>
    %83 = tpu.concatenate %72, %77, %82 in 0 : vector<1x32xf32>, vector<1x32xf32>, vector<1x32xf32> -> vector<3x32xf32>
    %84 = vector.broadcast %16 : vector<1x32xf32> to vector<3x32xf32>
    %85 = arith.mulf %83, %84 : vector<3x32xf32>
    %86 = vector.broadcast %12 : f32 to vector<3x32xf32>
    %87 = arith.mulf %86, %14 : vector<3x32xf32>
    %88 = arith.subf %85, %87 : vector<3x32xf32>
    %c0_15 = arith.constant 0 : index
    %c0_16 = arith.constant 0 : index
    %89 = vector.load %arg3[%c0_15, %c0_16] : memref<3x32xf32, #tpu.memory_space<vmem>>, vector<3x32xf32>
    tpu.vector_store %arg3[%c0_15, %c0_16], %88 {strides = array<i32>} : memref<3x32xf32, #tpu.memory_space<vmem>>, vector<3x32xf32>,
    %90 = arith.subf %24, %5 : f32
    %cst_17 = arith.constant 2.000000e+00 : f32
    %91 = arith.mulf %cst_17, %90 : f32
    %92 = arith.mulf %6, %7 : f32
    %93 = arith.mulf %92, %10 : f32
    %94 = arith.subf %91, %93 : f32
    %c0_18 = arith.constant 0 : index
    %95 = memref.load %arg4[%c0_18] : memref<3xf32, #tpu.memory_space<smem>>
    memref.store %94, %arg4[%c0_18] : memref<3xf32, #tpu.memory_space<smem>>
    %96 = arith.mulf %6, %6 : f32
    %97 = arith.mulf %96, %9 : f32
    %98 = arith.subf %97, %4 : f32
    %99 = arith.mulf %8, %7 : f32
    %100 = arith.mulf %99, %11 : f32
    %101 = arith.subf %98, %100 : f32
    %c1_19 = arith.constant 1 : index
    %102 = memref.load %arg4[%c1_19] : memref<3xf32, #tpu.memory_space<smem>>
    memref.store %101, %arg4[%c1_19] : memref<3xf32, #tpu.memory_space<smem>>
    %103 = arith.mulf %7, %7 : f32
    %104 = arith.mulf %103, %10 : f32
    %105 = arith.subf %104, %4 : f32
    %c2_20 = arith.constant 2 : index
    %106 = memref.load %arg4[%c2_20] : memref<3xf32, #tpu.memory_space<smem>>
    memref.store %105, %arg4[%c2_20] : memref<3xf32, #tpu.memory_space<smem>>
    return
  }
}

</mosaic_0001>

<llo_original>
// kernel: _lambda_.1
$region0: #{_lambda_.1}
  #allocation0 [shape = 'u32[]', space=smem, size = 0x4, offset = 0x4, fixed_abs, tag = 'smem constant byte address 0x4 - core index']
  #allocation1 [shape = 'u32[72,128]{1,0:T(1,128)}', space=vmem, size = 0x9000, scoped, tag = 'internal scratch']
  %s0 = inlined_call_operand.vmem [shape: f32[32,3], index: 0, kind: input, shape index: {}]
  %s1 = inlined_call_operand.vmem [shape: f32[8,32], index: 1, kind: input, shape index: {}]
  %s2 = inlined_call_operand.vmem [shape: f32[10], index: 2, kind: input, shape index: {}]
  %s3 = inlined_call_operand.hbm [shape: f32[3,32], index: 3, kind: output, shape index: {0}]
  %s4 = inlined_call_operand.hbm [shape: f32[3], index: 4, kind: output, shape index: {1}]
  %5 = xla_tuple %s3, %s4
  %s6 = sld [smem:[#allocation0]]
  $region34: #{_lambda_.1} parent=0
    _
  %s8 = ssub.s32 1, %s6
  %s9 = scalar_select 0, %s8, %s6
  $region1: #{_lambda_.1} parent=0
    #allocation2 [shape = 'u8[512]{0}', space=smem, size = 0x200, scoped, tag = 'input window, operand 2, single buffered']
    #allocation3 [shape = 's32[1]{0}', space=sflag, size = 0x4, scoped, tag = 'scoped memory for _lambda_.1']
    #allocation4 [shape = 's32[1]{0}', space=sflag, size = 0x4, scoped, tag = 'scoped memory for _lambda_.1']
    #allocation5 [shape = 's32[1]{0}', space=sflag, size = 0x4, scoped, tag = 'scoped memory for _lambda_.1']
    #allocation6 [shape = 'u8[2048]{0}', space=vmem, size = 0x800, scoped, tag = 'output window, operand 0, single buffered']
    #allocation7 [shape = 'u8[512]{0}', space=smem, size = 0x200, scoped, tag = 'output window, operand 1, single buffered']
    %10 = vsyncpa [#allocation5], 0
    %11 = vsyncpa [#allocation3], 0
    %12 = vsyncpa [#allocation4], 0
    // Predicated region
    $region2: #{_lambda_.1} parent=1 // pred_check
      _
    $region3: #{_lambda_.1} parent=1 // pred_check_branch
      %14 = sbr.rel (0) target = $region5
    $region4: #{_lambda_.1} parent=1 // pred_region
      _
    $region5: #{_lambda_.1} parent=1 // pred_fallthru
      _
    // Predicated region
    $region6: #{_lambda_.1} parent=1 // pred_check
      _
    $region7: #{_lambda_.1} parent=1 // pred_check_branch
      %16 = sbr.rel (0) target = $region9
    $region8: #{_lambda_.1} parent=1 // pred_region
      _
    $region9: #{_lambda_.1} parent=1 // pred_fallthru
      _
    // Predicated region
    $region10: #{_lambda_.1} parent=1 // pred_check
      _
    $region11: #{_lambda_.1} parent=1 // pred_check_branch
      %18 = sbr.rel (0) target = $region13
    $region12: #{_lambda_.1} parent=1 // pred_region
      %20 = vsyncadd [#allocation5], 0
      %s22 = sshll.u32 %s2, 4
      %s23 = int_to_ptr.vmem [resolvable:$true] %s22
      %25 = dma.vmem_to_smem %s23, 16, [#allocation2], [#allocation5]
    $region13: #{_lambda_.1} parent=1 // pred_fallthru
      _
    // Predicated region
    $region14: #{_lambda_.1} parent=1 // pred_check
      _
    $region15: #{_lambda_.1} parent=1 // pred_check_branch
      %27 = sbr.rel (0) target = $region17
    $region16: #{_lambda_.1} parent=1 // pred_region
      %29 = dma.done [#allocation5], 16
    $region17: #{_lambda_.1} parent=1 // pred_fallthru
      _
    %30 = sfence
    %v31 = vld [vmem:[%s0] sm:$0xff]
    %v32 = vld [vmem:[%s0 + $0x8] sm:$0xff]
    %v33 = vld [vmem:[%s0 + $0x10] sm:$0xff]
    %v34 = vld [vmem:[%s0 + $0x18] sm:$0xff]
    %v35 = vld [vmem:[%s1] sm:$0xff]
    %s36 = sld [smem:[#allocation2]]
    %s37 = sld [smem:[#allocation2 + $0x1]]
    %s38 = sld [smem:[#allocation2 + $0x2]]
    %s39 = sld [smem:[#allocation2 + $0x3]]
    %s40 = sld [smem:[#allocation2 + $0x4]]
    %s41 = sld [smem:[#allocation2 + $0x5]]
    %s42 = sld [smem:[#allocation2 + $0x6]]
    %s43 = sld [smem:[#allocation2 + $0x7]]
    %s44 = sld [smem:[#allocation2 + $0x8]]
    %s45 = sld [smem:[#allocation2 + $0x9]]
    %s46 = smul.f32 %s40, %s43
    %v47 = vmul.f32 %v35, %v35
    %v48 = vperm.slane %v35, 6
    %v49 = vmul.f32 %v47, %v48
    %v51 = vrot.slane %v49, 3
    %vm53 = vcmask 256000
    %v54 = vsel %vm53, %v51, 0.0
    %55 = vadd.xlane.f32.xlu0 %v54
    %v56 = vpop.xlane.xlu0 %55
    %v57 = vrot.slane %v56, 4
    %v58 = vadd.f32 %v56, %v57
    %v59 = vrot.slane %v58, 2
    %v60 = vadd.f32 %v58, %v59
    %v61 = vrot.slane %v60, 1
    %v62 = vadd.f32 %v60, %v61
    %s63 = vtos %v62
    %s64 = smul.f32 %s63, 0.5
    %v65 = vlaneseq
    %v66 = vshrl.u32 %v65, 7
    %v67 = vadd.s32 %v66, 8
    %v68 = vadd.s32 %v66, 16
    %v69 = vadd.s32 %v66, 24
    %v70 = vlaneseq
    %v71 = vand.u32 %v70, 127
    %vm72 = vcmp.eq.s32.totalorder %v66, %v71
    %vm73 = vcmp.eq.s32.totalorder %v67, %v71
    %vm74 = vcmp.eq.s32.totalorder %v68, %v71
    %vm75 = vcmp.eq.s32.totalorder %v69, %v71
    %77 = vset.pattern.permute.xlu0 0
    %78 = vperm.xlu0 %77, %v31
    %v79 = vpop.permute.xlu0 %78
    %82 = vset.pattern.permute.xlu0 0
    %83 = vperm.xlu0 %82, %v32
    %v84 = vpop.permute.xlu0 %83
    %87 = vset.pattern.permute.xlu0 0
    %88 = vperm.xlu0 %87, %v33
    %v89 = vpop.permute.xlu0 %88
    %92 = vset.pattern.permute.xlu0 0
    %93 = vperm.xlu0 %92, %v34
    %v94 = vpop.permute.xlu0 %93
    %v96 = vperm.slane %v35, 0
    %v97 = vsub.f32 %v79, %v96
    %v98 = vsub.f32 %v84, %v96
    %v99 = vsub.f32 %v89, %v96
    %v100 = vsub.f32 %v94, %v96
    %101 = vset.pattern.permute.xlu0 1
    %102 = vperm.xlu0 %101, %v31
    %v103 = vpop.permute.xlu0 %102
    %105 = vset.pattern.permute.xlu0 1
    %106 = vperm.xlu0 %105, %v32
    %v107 = vpop.permute.xlu0 %106
    %109 = vset.pattern.permute.xlu0 1
    %110 = vperm.xlu0 %109, %v33
    %v111 = vpop.permute.xlu0 %110
    %113 = vset.pattern.permute.xlu0 1
    %114 = vperm.xlu0 %113, %v34
    %v115 = vpop.permute.xlu0 %114
    %v117 = vperm.slane %v35, 1
    %v118 = vsub.f32 %v103, %v117
    %v119 = vsub.f32 %v107, %v117
    %v120 = vsub.f32 %v111, %v117
    %v121 = vsub.f32 %v115, %v117
    %122 = vset.pattern.permute.xlu0 2
    %123 = vperm.xlu0 %122, %v31
    %v124 = vpop.permute.xlu0 %123
    %126 = vset.pattern.permute.xlu0 2
    %127 = vperm.xlu0 %126, %v32
    %v128 = vpop.permute.xlu0 %127
    %130 = vset.pattern.permute.xlu0 2
    %131 = vperm.xlu0 %130, %v33
    %v132 = vpop.permute.xlu0 %131
    %134 = vset.pattern.permute.xlu0 2
    %135 = vperm.xlu0 %134, %v34
    %v136 = vpop.permute.xlu0 %135
    %v138 = vperm.slane %v35, 2
    %v139 = vsub.f32 %v124, %v138
    %v140 = vsub.f32 %v128, %v138
    %v141 = vsub.f32 %v132, %v138
    %v142 = vsub.f32 %v136, %v138
    %v143 = vmul.f32 %v97, %v97
    %v144 = vmul.f32 %v98, %v98
    %v145 = vmul.f32 %v99, %v99
    %v146 = vmul.f32 %v100, %v100
    %v147 = vmul.f32 %v118, %v118
    %v148 = vmul.f32 %v119, %v119
    %v149 = vmul.f32 %v120, %v120
    %v150 = vmul.f32 %v121, %v121
    %v151 = vadd.f32 %v143, %v147
    %v152 = vadd.f32 %v144, %v148
    %v153 = vadd.f32 %v145, %v149
    %v154 = vadd.f32 %v146, %v150
    %v155 = vmul.f32 %v139, %v139
    %v156 = vmul.f32 %v140, %v140
    %v157 = vmul.f32 %v141, %v141
    %v158 = vmul.f32 %v142, %v142
    %v159 = vadd.f32 %v151, %v155
    %v160 = vadd.f32 %v152, %v156
    %v161 = vadd.f32 %v153, %v157
    %v162 = vadd.f32 %v154, %v158
    %v163 = vsel %vm72, 1.0, %v159
    %v164 = vsel %vm73, 1.0, %v160
    %v165 = vsel %vm74, 1.0, %v161
    %v166 = vsel %vm75, 1.0, %v162
    %v167 = vrcp.pop %v163
    %v168 = vrcp.pop %v164
    %v169 = vrcp.pop %v165
    %v170 = vrcp.pop %v166
    %v171 = vmul.f32 %v163, %v167
    %v172 = vmul.f32 %v164, %v168
    %v173 = vmul.f32 %v165, %v169
    %v174 = vmul.f32 %v166, %v170
    %v175 = vsub.f32 2.0, %v171
    %v176 = vsub.f32 2.0, %v172
    %v177 = vsub.f32 2.0, %v173
    %v178 = vsub.f32 2.0, %v174
    %v179 = vmul.f32 %v167, %v175
    %v180 = vmul.f32 %v168, %v176
    %v181 = vmul.f32 %v169, %v177
    %v182 = vmul.f32 %v170, %v178
    %v183 = vstv %s37
    %v184 = vmul.f32 %v183, %v179
    %v185 = vmul.f32 %v183, %v180
    %v186 = vmul.f32 %v183, %v181
    %v187 = vmul.f32 %v183, %v182
    %v188 = vmul.f32 %v184, %v184
    %v189 = vmul.f32 %v185, %v185
    %v190 = vmul.f32 %v186, %v186
    %v191 = vmul.f32 %v187, %v187
    %v192 = vmul.f32 %v188, %v184
    %v193 = vmul.f32 %v189, %v185
    %v194 = vmul.f32 %v190, %v186
    %v195 = vmul.f32 %v191, %v187
    %v196 = vmul.f32 %v192, %v192
    %v197 = vmul.f32 %v193, %v193
    %v198 = vmul.f32 %v194, %v194
    %v199 = vmul.f32 %v195, %v195
    %v200 = vmul.f32 %v196, 2.0
    %v201 = vmul.f32 %v197, 2.0
    %v202 = vmul.f32 %v198, 2.0
    %v203 = vmul.f32 %v199, 2.0
    %v204 = vsub.f32 %v200, %v192
    %v205 = vsub.f32 %v201, %v193
    %v206 = vsub.f32 %v202, %v194
    %v207 = vsub.f32 %v203, %v195
    %v208 = vstv %s36
    %v209 = vmul.f32 %v208, %v204
    %v210 = vmul.f32 %v208, %v205
    %v211 = vmul.f32 %v208, %v206
    %v212 = vmul.f32 %v208, %v207
    %v213 = vmul.f32 %v209, %v179
    %v214 = vmul.f32 %v210, %v180
    %v215 = vmul.f32 %v211, %v181
    %v216 = vmul.f32 %v212, %v182
    %v217 = vsel %vm72, 0.0, %v213
    %v218 = vsel %vm73, 0.0, %v214
    %v219 = vsel %vm74, 0.0, %v215
    %v220 = vsel %vm75, 0.0, %v216
    %v221 = vmul.f32 %v217, %v97
    %v222 = vmul.f32 %v218, %v98
    %v223 = vmul.f32 %v219, %v99
    %v224 = vmul.f32 %v220, %v100
    %vm225 = vcmask 261120
    %v226 = vsel %vm225, %v221, 0.0
    %v227 = vsel %vm225, %v222, 0.0
    %v228 = vadd.f32 %v226, %v227
    %v229 = vsel %vm225, %v223, 0.0
    %v230 = vadd.f32 %v228, %v229
    %v231 = vsel %vm225, %v224, 0.0
    %v232 = vadd.f32 %v230, %v231
    %v233 = vrot.slane %v232, 4
    %v234 = vadd.f32 %v232, %v233
    %v235 = vrot.slane %v234, 2
    %v236 = vadd.f32 %v234, %v235
    %v237 = vrot.slane %v236, 1
    %v238 = vadd.f32 %v236, %v237
    %v239 = vsub.f32 0.0, %v238
    %v240 = vmul.f32 %v217, %v118
    %v241 = vmul.f32 %v218, %v119
    %v242 = vmul.f32 %v219, %v120
    %v243 = vmul.f32 %v220, %v121
    %v244 = vsel %vm225, %v240, 0.0
    %v245 = vsel %vm225, %v241, 0.0
    %v246 = vadd.f32 %v244, %v245
    %v247 = vsel %vm225, %v242, 0.0
    %v248 = vadd.f32 %v246, %v247
    %v249 = vsel %vm225, %v243, 0.0
    %v250 = vadd.f32 %v248, %v249
    %v251 = vrot.slane %v250, 4
    %v252 = vadd.f32 %v250, %v251
    %v253 = vrot.slane %v252, 2
    %v254 = vadd.f32 %v252, %v253
    %v255 = vrot.slane %v254, 1
    %v256 = vadd.f32 %v254, %v255
    %v257 = vsub.f32 0.0, %v256
    %v258 = vmul.f32 %v217, %v139
    %v259 = vmul.f32 %v218, %v140
    %v260 = vmul.f32 %v219, %v141
    %v261 = vmul.f32 %v220, %v142
    %v262 = vsel %vm225, %v258, 0.0
    %v263 = vsel %vm225, %v259, 0.0
    %v264 = vadd.f32 %v262, %v263
    %v265 = vsel %vm225, %v260, 0.0
    %v266 = vadd.f32 %v264, %v265
    %v267 = vsel %vm225, %v261, 0.0
    %v268 = vadd.f32 %v266, %v267
    %v269 = vrot.slane %v268, 4
    %v270 = vadd.f32 %v268, %v269
    %v271 = vrot.slane %v270, 2
    %v272 = vadd.f32 %v270, %v271
    %v273 = vrot.slane %v272, 1
    %v274 = vadd.f32 %v272, %v273
    %v275 = vsub.f32 0.0, %v274
    %vm276 = vcmask 1040384
    %v277 = vsel %vm276, %v239, %v257
    %vm278 = vcmask 1041408
    %v279 = vsel %vm278, %v277, %v275
    %v280 = vperm.slane %v35, 7
    %v281 = vmul.f32 %v279, %v280
    %v282 = vstv %s46
    %v283 = vmul.f32 %v282, %v35
    %v285 = vrot.slane %v283, 3
    %v287 = vsub.f32 %v281, %v285
    %288 = vst.msk [vmem:[#allocation6] sm:$0x7] %vm53, %v287
    %s289 = ssub.f32 %s64, %s39
    %s290 = smul.f32 %s289, 2.0
    %s291 = smul.f32 %s40, %s41
    %s292 = smul.f32 %s291, %s44
    %s293 = ssub.f32 %s290, %s292
    %s294 = scalar_lea.smem [#allocation7], 0
    %295 = sst [smem:[%s294]] %s293
    %s296 = smul.f32 %s40, %s40
    %s297 = smul.f32 %s296, %s43
    %s298 = ssub.f32 %s297, %s38
    %s299 = smul.f32 %s42, %s41
    %s300 = smul.f32 %s299, %s45
    %s301 = ssub.f32 %s298, %s300
    %s302 = scalar_lea.smem [#allocation7], 1
    %303 = sst [smem:[%s302]] %s301
    %s304 = smul.f32 %s41, %s41
    %s305 = smul.f32 %s304, %s44
    %s306 = ssub.f32 %s305, %s38
    %s307 = scalar_lea.smem [#allocation7], 2
    %308 = sst [smem:[%s307]] %s306
    // Predicated region
    $region18: #{_lambda_.1} parent=1 // pred_check
      _
    $region19: #{_lambda_.1} parent=1 // pred_check_branch
      %310 = sbr.rel (0) target = $region21
    $region20: #{_lambda_.1} parent=1 // pred_region
      %312 = vsyncadd [#allocation3], 0
      %s314 = sshll.u32 [#allocation6], 4
      %s315 = int_to_ptr.vmem [resolvable:$true] %s314
      %s316 = sshll.u32 %s3, 4
      %s317 = int_to_ptr.hbm [resolvable:$true] %s316
      %319 = dma.vmem_to_hbm [thread:$0]  %s315, 64, %s317, [#allocation3]
    $region21: #{_lambda_.1} parent=1 // pred_fallthru
      _
    // Predicated region
    $region22: #{_lambda_.1} parent=1 // pred_check
      _
    $region23: #{_lambda_.1} parent=1 // pred_check_branch
      %321 = sbr.rel (0) target = $region25
    $region24: #{_lambda_.1} parent=1 // pred_region
      %323 = vsyncadd [#allocation4], 0
      %s325 = sshll.u32 %s4, 4
      %s326 = int_to_ptr.hbm [resolvable:$true] %s325
      %328 = dma.smem_to_hbm [#allocation7], 16, %s326, [#allocation4]
    $region25: #{_lambda_.1} parent=1 // pred_fallthru
      _
    // Predicated region
    $region26: #{_lambda_.1} parent=1 // pred_check
      _
    $region27: #{_lambda_.1} parent=1 // pred_check_branch
      %330 = sbr.rel (0) target = $region29
    $region28: #{_lambda_.1} parent=1 // pred_region
      %332 = dma.done [#allocation3], 64
    $region29: #{_lambda_.1} parent=1 // pred_fallthru
      _
    // Predicated region
    $region30: #{_lambda_.1} parent=1 // pred_check
      _
    $region31: #{_lambda_.1} parent=1 // pred_check_branch
      %334 = sbr.rel (0) target = $region33
    $region32: #{_lambda_.1} parent=1 // pred_region
      %336 = dma.done [#allocation4], 16
    $region33: #{_lambda_.1} parent=1 // pred_fallthru
      _
    %337 = sfence
    %338 = vsyncpa [#allocation3], 1
    %339 = vsyncpa [#allocation4], 1
    %340 = vsyncpa [#allocation5], 1

</llo_original>
